<compile_context>
chip_gen: v6e
topology: v6e:2x2x1
jax: 0.10.0
libtpu: 0.0.40
codegen_flags: <defaults>
</compile_context>

<pallas_src>
import functools

import numpy as np
import jax
import jax.numpy as jnp
from jax.experimental import pallas as pl
from jax.experimental.pallas import tpu as pltpu

_LANE = 128
_NEG_INF = float("-inf")


# --------------------------------------------------------------------------- #
# Kernel: streaming global sum / max over the flattened spatial axis.
# --------------------------------------------------------------------------- #
def _pool_kernel(x_ref, sum_ref, max_ref, sum_acc, max_acc, *,
                 s_total, ts, subw, tiles_per_split):
    # x_ref   : (1, C, ts)    one spatial tile of one (batch, split) cell
    # sum_ref : (1, 1, C, 1)  partial spatial sum  for this (n, split)   [f32]
    # max_ref : (1, 1, C, 1)  partial spatial max  for this (n, split)   [f32]
    # sum_acc / max_acc : (C, subw) f32 lane-dense accumulators (VPU-only updates)
    p = pl.program_id(1)
    t = pl.program_id(2)
    C = sum_acc.shape[0]
    n_sub = ts // subw

    @pl.when(t == 0)
    def _init():
        sum_acc[...] = jnp.zeros_like(sum_acc)
        max_acc[...] = jnp.full_like(max_acc, _NEG_INF)

    # Logical start of this tile on the flattened spatial axis.  The tile may be
    # ragged (start + ts > s_total) or entirely past the end (empty split tail);
    # both are handled by masking (the index_map already clamps the DMA in-bounds).
    start = (p * tiles_per_split + t) * ts
    valid = s_total - start                       # may be <= 0 or < ts

    # Single pass over the tile: each sub-tile is loaded once and feeds both the
    # running sum and the running max (no full-tile f32 temporaries, no per-tile
    # cross-lane reduction).
    for q in range(n_sub):                        # static unroll
        chunk = x_ref[0, :, q * subw:(q + 1) * subw].astype(jnp.float32)
        limit = valid - q * subw

        @pl.when(limit >= subw)                   # common case: fully valid, no mask
        def _full(chunk=chunk):
            sum_acc[...] = sum_acc[...] + chunk
            max_acc[...] = jnp.maximum(max_acc[...], chunk)

        @pl.when(limit < subw)                    # ragged / empty sub-tile
        def _ragged(chunk=chunk, limit=limit):
            m = jax.lax.broadcasted_iota(jnp.int32, (C, subw), 1) < limit
            sum_acc[...] = sum_acc[...] + jnp.where(m, chunk, 0.0)
            max_acc[...] = jnp.maximum(max_acc[...],
                                       jnp.where(m, chunk, _NEG_INF))

    @pl.when(t == pl.num_programs(2) - 1)
    def _finalize():
        # One cross-lane (XLU) reduction per (batch, split) cell.
        sum_ref[0, 0] = jnp.sum(sum_acc[...], axis=-1, keepdims=True)
        max_ref[0, 0] = jnp.max(max_acc[...], axis=-1, keepdims=True)


# --------------------------------------------------------------------------- #
# Tile / VMEM sizing helpers (generation aware).
# --------------------------------------------------------------------------- #
def _hw_config():
    """Returns (target_block_bytes, vmem_capacity_bytes) for the local TPU."""
    kind = ""
    try:
        kind = jax.devices()[0].device_kind.lower()
    except Exception:
        pass
    is_v7 = ("v7" in kind) or ("tpu7" in kind) or ("7x" in kind)

    vmem_cap = None
    try:
        vmem_cap = int(getattr(pltpu.get_tpu_info(), "vmem_capacity_bytes"))
    except Exception:
        vmem_cap = None
    if not vmem_cap or vmem_cap <= 0:
        vmem_cap = (64 if is_v7 else 128) * (1 << 20)

    if is_v7:
        target = 8 * (1 << 20)   # ~3.2 TB/s HBM: big tiles amortize ~0.35us/step
    elif "v6" in kind or "6e" in kind:
        target = 6 * (1 << 20)
    elif "v5" in kind:
        target = 3 * (1 << 20)   # ~0.8 TB/s: 2-4 MiB already >85% of roofline
    else:
        target = 4 * (1 << 20)
    return target, vmem_cap


def _pick_tiles(S, C, itemsize, target_block_bytes):
    """Pick (tile_lanes, subtile_lanes): lane-aligned, no divisibility-of-S needed."""
    row_bytes = max(1, C * itemsize)
    lanes = (target_block_bytes // row_bytes) // _LANE * _LANE
    lanes = max(_LANE, lanes)
    s_pad = pl.cdiv(S, _LANE) * _LANE            # never bigger than padded S
    lanes = min(lanes, s_pad)
    # sub-tile width: keep the (C, subw) f32 accumulators at ~<=1 MiB each
    subw_cap = max(_LANE, ((1 << 20) // (4 * C)) // _LANE * _LANE)
    subw = min(lanes, 4096, subw_cap)
    ts = max(subw, (lanes // subw) * subw)       # exact multiple of subw
    return int(ts), int(subw)


# --------------------------------------------------------------------------- #
# Wrapper: full ChannelAttention3D forward.
# --------------------------------------------------------------------------- #
def channel_attention_3d(x, fc1_w, fc2_w, *, nsplit=None):
    """x: (N, C, D, H, W); fc1_w: (Ch, C, 1, 1, 1); fc2_w: (C, Ch, 1, 1, 1).

    Returns sigmoid(fc2(relu(fc1(avgpool(x)))) + fc2(relu(fc1(maxpool(x)))))
    of shape (N, C, 1, 1, 1) — same semantics as the PyTorch module (no biases).
    """
    N, C, D, H, W = x.shape
    Ch = fc1_w.shape[0]
    S = D * H * W
    x3 = x.reshape(N, C, S)        # contiguity-preserving reshape, no HBM transpose

    if nsplit is None:
        # v7x dual-TensorCore utilization when batch parallelism alone is weak.
        nsplit = 2 if (N % 2 == 1) else 1

    target_block_bytes, vmem_cap = _hw_config()
    ts, subw = _pick_tiles(S, C, x.dtype.itemsize, target_block_bytes)
    total_blocks = pl.cdiv(S, ts)
    tiles_per_split = pl.cdiv(total_blocks, nsplit)
    grid = (N, nsplit, tiles_per_split)

    # Explicit VMEM budget: double-buffered input block + accumulators + slack.
    block_bytes = C * ts * x.dtype.itemsize
    acc_bytes = 2 * C * subw * 4
    need = 2 * block_bytes + 2 * acc_bytes + 4 * (1 << 20)
    vmem_limit = int(max(need, 32 * (1 << 20)))
    vmem_limit = int(min(vmem_limit, max(need, vmem_cap - 8 * (1 << 20))))

    kernel = functools.partial(_pool_kernel, s_total=S, ts=ts, subw=subw,
                               tiles_per_split=tiles_per_split)

    def x_map(n, p, t):
        # Clamp so the DMA is always in-bounds; empty/ragged tails are masked
        # inside the kernel via the unclamped logical offset.
        return (n, 0, jnp.minimum(p * tiles_per_split + t, total_blocks - 1))

    psum, pmax = pl.pallas_call(
        kernel,
        out_shape=(jax.ShapeDtypeStruct((N, nsplit, C, 1), jnp.float32),
                   jax.ShapeDtypeStruct((N, nsplit, C, 1), jnp.float32)),
        grid_spec=pltpu.PrefetchScalarGridSpec(
            num_scalar_prefetch=0,
            grid=grid,
            in_specs=[pl.BlockSpec((1, C, ts), x_map)],
            out_specs=(pl.BlockSpec((1, 1, C, 1), lambda n, p, t: (n, p, 0, 0)),
                       pl.BlockSpec((1, 1, C, 1), lambda n, p, t: (n, p, 0, 0))),
            scratch_shapes=[pltpu.VMEM((C, subw), jnp.float32),   # running sum
                            pltpu.VMEM((C, subw), jnp.float32)],  # running max
        ),
        compiler_params=pltpu.CompilerParams(
            dimension_semantics=("parallel", "parallel", "arbitrary"),
            vmem_limit_bytes=vmem_limit,
        ),
    )(x3)

    # Tiny epilogue on (N, C)-sized data: combine split partials, then the shared
    # bottleneck MLP (1x1x1 convs on the pooled tensor) + sigmoid.  Negligible
    # next to the streaming reduction; fuses into the surrounding jit in a model.
    avg = jnp.sum(psum[..., 0], axis=1) * (1.0 / S)          # (N, C)
    mx = jnp.max(pmax[..., 0], axis=1)                       # (N, C)
    w1 = fc1_w.reshape(Ch, C).astype(jnp.float32)
    w2 = fc2_w.reshape(C, Ch).astype(jnp.float32)
    h = jnp.maximum(avg @ w1.T, 0.0) + jnp.maximum(mx @ w1.T, 0.0)
    gate = jax.nn.sigmoid(h @ w2.T)                          # fc2 is linear: fold adds
    return gate.astype(x.dtype).reshape(N, C, 1, 1, 1)


# --------------------------------------------------------------------------- #
# Pure-JAX reference (matches torch ChannelAttention3D semantics).
# --------------------------------------------------------------------------- #
def channel_attention_3d_ref(x, fc1_w, fc2_w):
    N, C = x.shape[0], x.shape[1]
    Ch = fc1_w.shape[0]
    w1 = fc1_w.reshape(Ch, C)
    w2 = fc2_w.reshape(C, Ch)
    avg = jnp.mean(x, axis=(2, 3, 4))                        # (N, C)
    mx = jnp.max(x, axis=(2, 3, 4))                          # (N, C)

    def branch(v):
        return jnp.maximum(v @ w1.T, 0.0) @ w2.T

    gate = jax.nn.sigmoid(branch(avg) + branch(mx))
    return gate.reshape(N, C, 1, 1, 1)


if __name__ == "__main__":
    key = jax.random.PRNGKey(0)
    kx, k1, k2 = jax.random.split(key, 3)

    # Small but awkward shapes: spatial extent 7*6*5 = 210 is NOT a multiple of
    # 128, exercising the ragged-tile masking path.
    N, C, D, H, W = 2, 32, 7, 6, 5
    reduction = 16
    Ch = C // reduction                                      # = 2

    x = jax.random.normal(kx, (N, C, D, H, W), dtype=jnp.float32)
    fc1_w = jax.random.normal(k1, (Ch, C, 1, 1, 1), jnp.float32) / np.sqrt(float(C))
    fc2_w = jax.random.normal(k2, (C, Ch, 1, 1, 1), jnp.float32) / np.sqrt(float(Ch))

    out = jax.block_until_ready(channel_attention_3d(x, fc1_w, fc2_w))
    ref = jax.block_until_ready(channel_attention_3d_ref(x, fc1_w, fc2_w))
    assert out.shape == (N, C, 1, 1, 1), out.shape
    np.testing.assert_allclose(np.asarray(out), np.asarray(ref), rtol=1e-3, atol=1e-3)

    # N == 1 exercises the 2-way spatial split (dual-TensorCore path on v7x),
    # including the fully-masked empty-split tail.
    x1 = x[:1]
    out1 = jax.block_until_ready(channel_attention_3d(x1, fc1_w, fc2_w))
    ref1 = jax.block_until_ready(channel_attention_3d_ref(x1, fc1_w, fc2_w))
    np.testing.assert_allclose(np.asarray(out1), np.asarray(ref1), rtol=1e-3, atol=1e-3)

    print("KERNEL_OK")
</pallas_src>

<mosaic_0001>
module attributes {stable_mosaic.version = 11 : i64} {
  func.func @_pool_kernel(%arg0: i32, %arg1: i32, %arg2: i32, %arg3: memref<1x32x256xf32, #tpu.memory_space<vmem>>, %arg4: memref<1x1x32x1xf32, #tpu.memory_space<vmem>>, %arg5: memref<1x1x32x1xf32, #tpu.memory_space<vmem>>, %arg6: memref<32x256xf32, #tpu.memory_space<vmem>>, %arg7: memref<32x256xf32, #tpu.memory_space<vmem>>) attributes {dimension_semantics = [#tpu.dimension_semantics<parallel>, #tpu.dimension_semantics<parallel>, #tpu.dimension_semantics<arbitrary>], iteration_bounds = array<i64: 2, 1, 1>, scalar_prefetch = 0 : i64, scratch_operands = 2 : i64, tpu.core_type = #tpu.core_type<tc>, window_params = [{transform_indices = @transform_0, window_bounds = array<i64: 1, 32, 256>}, {transform_indices = @transform_1, window_bounds = array<i64: 1, 1, 32, 1>}, {transform_indices = @transform_2, window_bounds = array<i64: 1, 1, 32, 1>}]} {
    %c0_i32 = arith.constant 0 : i32
    %0 = arith.cmpi eq, %arg2, %c0_i32 : i32
    %1 = arith.extui %0 : i1 to i32
    %c0_i32_0 = arith.constant 0 : i32
    %2 = arith.cmpi ne, %1, %c0_i32_0 : i32
    scf.if %2 {
      %cst = arith.constant 0.000000e+00 : f32
      %19 = vector.broadcast %cst : f32 to vector<32x256xf32>
      %c0_10 = arith.constant 0 : index
      %c0_11 = arith.constant 0 : index
      %20 = vector.load %arg6[%c0_10, %c0_11] : memref<32x256xf32, #tpu.memory_space<vmem>>, vector<32x256xf32>
      tpu.vector_store %arg6[%c0_10, %c0_11], %19 {strides = array<i32>} : memref<32x256xf32, #tpu.memory_space<vmem>>, vector<32x256xf32>,
      %cst_12 = arith.constant 0xFF800000 : f32
      %21 = vector.broadcast %cst_12 : f32 to vector<32x256xf32>
      %c0_13 = arith.constant 0 : index
      %c0_14 = arith.constant 0 : index
      %22 = vector.load %arg7[%c0_13, %c0_14] : memref<32x256xf32, #tpu.memory_space<vmem>>, vector<32x256xf32>
      tpu.vector_store %arg7[%c0_13, %c0_14], %21 {strides = array<i32>} : memref<32x256xf32, #tpu.memory_space<vmem>>, vector<32x256xf32>,
    } else {
    }
    %c1_i32 = arith.constant 1 : i32
    %3 = arith.muli %arg1, %c1_i32 : i32
    %4 = arith.addi %3, %arg2 : i32
    %c256_i32 = arith.constant 256 : i32
    %5 = arith.muli %4, %c256_i32 : i32
    %c210_i32 = arith.constant 210 : i32
    %6 = arith.subi %c210_i32, %5 : i32
    %c0 = arith.constant 0 : index
    %c0_1 = arith.constant 0 : index
    %c0_2 = arith.constant 0 : index
    %7 = vector.load %arg3[%c0, %c0_1, %c0_2] : memref<1x32x256xf32, #tpu.memory_space<vmem>>, vector<1x32x256xf32>
    %8 = vector.shape_cast %7 : vector<1x32x256xf32> to vector<32x256xf32>
    %c0_i32_3 = arith.constant 0 : i32
    %9 = arith.subi %6, %c0_i32_3 : i32
    %c256_i32_4 = arith.constant 256 : i32
    %10 = arith.cmpi sge, %9, %c256_i32_4 : i32
    %11 = arith.extui %10 : i1 to i32
    %c0_i32_5 = arith.constant 0 : i32
    %12 = arith.cmpi ne, %11, %c0_i32_5 : i32
    scf.if %12 {
      %c0_10 = arith.constant 0 : index
      %c0_11 = arith.constant 0 : index
      %19 = vector.load %arg6[%c0_10, %c0_11] : memref<32x256xf32, #tpu.memory_space<vmem>>, vector<32x256xf32>
      %20 = arith.addf %19, %8 : vector<32x256xf32>
      %c0_12 = arith.constant 0 : index
      %c0_13 = arith.constant 0 : index
      %21 = vector.load %arg6[%c0_12, %c0_13] : memref<32x256xf32, #tpu.memory_space<vmem>>, vector<32x256xf32>
      tpu.vector_store %arg6[%c0_12, %c0_13], %20 {strides = array<i32>} : memref<32x256xf32, #tpu.memory_space<vmem>>, vector<32x256xf32>,
      %c0_14 = arith.constant 0 : index
      %c0_15 = arith.constant 0 : index
      %22 = vector.load %arg7[%c0_14, %c0_15] : memref<32x256xf32, #tpu.memory_space<vmem>>, vector<32x256xf32>
      %23 = arith.maximumf %22, %8 : vector<32x256xf32>
      %c0_16 = arith.constant 0 : index
      %c0_17 = arith.constant 0 : index
      %24 = vector.load %arg7[%c0_16, %c0_17] : memref<32x256xf32, #tpu.memory_space<vmem>>, vector<32x256xf32>
      tpu.vector_store %arg7[%c0_16, %c0_17], %23 {strides = array<i32>} : memref<32x256xf32, #tpu.memory_space<vmem>>, vector<32x256xf32>,
    } else {
    }
    %c256_i32_6 = arith.constant 256 : i32
    %13 = arith.cmpi slt, %9, %c256_i32_6 : i32
    %14 = arith.extui %13 : i1 to i32
    %c0_i32_7 = arith.constant 0 : i32
    %15 = arith.cmpi ne, %14, %c0_i32_7 : i32
    scf.if %15 {
      %19 = tpu.iota {dimensions = array<i32: 1>} : vector<32x256xi32>
      %20 = vector.broadcast %9 : i32 to vector<32x256xi32>
      %21 = arith.cmpi slt, %19, %20 : vector<32x256xi32>
      %c0_10 = arith.constant 0 : index
      %c0_11 = arith.constant 0 : index
      %22 = vector.load %arg6[%c0_10, %c0_11] : memref<32x256xf32, #tpu.memory_space<vmem>>, vector<32x256xf32>
      %cst = arith.constant 0.000000e+00 : f32
      %23 = vector.broadcast %cst : f32 to vector<32x256xf32>
      %24 = arith.select %21, %8, %23 : vector<32x256xi1>, vector<32x256xf32>
      %25 = arith.addf %22, %24 : vector<32x256xf32>
      %c0_12 = arith.constant 0 : index
      %c0_13 = arith.constant 0 : index
      %26 = vector.load %arg6[%c0_12, %c0_13] : memref<32x256xf32, #tpu.memory_space<vmem>>, vector<32x256xf32>
      tpu.vector_store %arg6[%c0_12, %c0_13], %25 {strides = array<i32>} : memref<32x256xf32, #tpu.memory_space<vmem>>, vector<32x256xf32>,
      %c0_14 = arith.constant 0 : index
      %c0_15 = arith.constant 0 : index
      %27 = vector.load %arg7[%c0_14, %c0_15] : memref<32x256xf32, #tpu.memory_space<vmem>>, vector<32x256xf32>
      %cst_16 = arith.constant 0xFF800000 : f32
      %28 = vector.broadcast %cst_16 : f32 to vector<32x256xf32>
      %29 = arith.select %21, %8, %28 : vector<32x256xi1>, vector<32x256xf32>
      %30 = arith.maximumf %27, %29 : vector<32x256xf32>
      %c0_17 = arith.constant 0 : index
      %c0_18 = arith.constant 0 : index
      %31 = vector.load %arg7[%c0_17, %c0_18] : memref<32x256xf32, #tpu.memory_space<vmem>>, vector<32x256xf32>
      tpu.vector_store %arg7[%c0_17, %c0_18], %30 {strides = array<i32>} : memref<32x256xf32, #tpu.memory_space<vmem>>, vector<32x256xf32>,
    } else {
    }
    %c0_i32_8 = arith.constant 0 : i32
    %16 = arith.cmpi eq, %arg2, %c0_i32_8 : i32
    %17 = arith.extui %16 : i1 to i32
    %c0_i32_9 = arith.constant 0 : i32
    %18 = arith.cmpi ne, %17, %c0_i32_9 : i32
    scf.if %18 {
      %c0_10 = arith.constant 0 : index
      %c0_11 = arith.constant 0 : index
      %19 = vector.load %arg6[%c0_10, %c0_11] : memref<32x256xf32, #tpu.memory_space<vmem>>, vector<32x256xf32>
      %cst = arith.constant dense<0.000000e+00> : vector<32xf32>
      %20 = vector.multi_reduction <add>, %19, %cst [1] : vector<32x256xf32> to vector<32xf32>
      %21 = vector.shape_cast %20 : vector<32xf32> to vector<32x1xf32>
      %c0_12 = arith.constant 0 : index
      %c0_13 = arith.constant 0 : index
      %c0_14 = arith.constant 0 : index
      %c0_15 = arith.constant 0 : index
      %22 = vector.load %arg4[%c0_12, %c0_13, %c0_14, %c0_15] : memref<1x1x32x1xf32, #tpu.memory_space<vmem>>, vector<1x1x32x1xf32>
      %23 = vector.shape_cast %22 : vector<1x1x32x1xf32> to vector<32x1xf32>
      %24 = vector.shape_cast %21 : vector<32x1xf32> to vector<1x1x32x1xf32>
      tpu.vector_store %arg4[%c0_12, %c0_13, %c0_14, %c0_15], %24 {strides = array<i32>} : memref<1x1x32x1xf32, #tpu.memory_space<vmem>>, vector<1x1x32x1xf32>,
      %c0_16 = arith.constant 0 : index
      %c0_17 = arith.constant 0 : index
      %25 = vector.load %arg7[%c0_16, %c0_17] : memref<32x256xf32, #tpu.memory_space<vmem>>, vector<32x256xf32>
      %cst_18 = arith.constant dense<0xFF800000> : vector<32xf32>
      %26 = vector.multi_reduction <maximumf>, %25, %cst_18 [1] : vector<32x256xf32> to vector<32xf32>
      %27 = vector.shape_cast %26 : vector<32xf32> to vector<32x1xf32>
      %c0_19 = arith.constant 0 : index
      %c0_20 = arith.constant 0 : index
      %c0_21 = arith.constant 0 : index
      %c0_22 = arith.constant 0 : index
      %28 = vector.load %arg5[%c0_19, %c0_20, %c0_21, %c0_22] : memref<1x1x32x1xf32, #tpu.memory_space<vmem>>, vector<1x1x32x1xf32>
      %29 = vector.shape_cast %28 : vector<1x1x32x1xf32> to vector<32x1xf32>
      %30 = vector.shape_cast %27 : vector<32x1xf32> to vector<1x1x32x1xf32>
      tpu.vector_store %arg5[%c0_19, %c0_20, %c0_21, %c0_22], %30 {strides = array<i32>} : memref<1x1x32x1xf32, #tpu.memory_space<vmem>>, vector<1x1x32x1xf32>,
    } else {
    }
    return
  }
  func.func @transform_0(%arg0: i32, %arg1: i32, %arg2: i32) -> (i32, i32, i32) {
    %c1_i32 = arith.constant 1 : i32
    %0 = arith.muli %arg1, %c1_i32 : i32
    %1 = arith.addi %0, %arg2 : i32
    %c0_i32 = arith.constant 0 : i32
    %2 = arith.minsi %1, %c0_i32 : i32
    %c0_i32_0 = arith.constant 0 : i32
    %c0_i32_1 = arith.constant 0 : i32
    return %arg0, %c0_i32_0, %2 : i32, i32, i32
  }
  func.func @transform_1(%arg0: i32, %arg1: i32, %arg2: i32) -> (i32, i32, i32, i32) {
    %c0_i32 = arith.constant 0 : i32
    %c0_i32_0 = arith.constant 0 : i32
    %c0_i32_1 = arith.constant 0 : i32
    return %arg0, %arg1, %c0_i32, %c0_i32_0 : i32, i32, i32, i32
  }
  func.func @transform_2(%arg0: i32, %arg1: i32, %arg2: i32) -> (i32, i32, i32, i32) {
    %c0_i32 = arith.constant 0 : i32
    %c0_i32_0 = arith.constant 0 : i32
    %c0_i32_1 = arith.constant 0 : i32
    return %arg0, %arg1, %c0_i32, %c0_i32_0 : i32, i32, i32, i32
  }
}

</mosaic_0001>

<llo_original>
// kernel: tpu_custom_call.1
$region0: #{tpu_custom_call.1}
  #allocation0 [shape = 'u32[]', space=smem, size = 0x4, offset = 0x4, fixed_abs, tag = 'smem constant byte address 0x4 - core index']
  #allocation1 [shape = 'u32[144,128]{1,0:T(1,128)}', space=vmem, size = 0x12000, scoped, tag = 'internal scratch']
  #allocation2 [shape = 'f32[32,256]{1,0:T(8,128)}', space=vmem, size = 0x8000, scoped, tag = 'scratch operand']
  #allocation3 [shape = 'f32[32,256]{1,0:T(8,128)}', space=vmem, size = 0x8000, scoped, tag = 'scratch operand']
  %s0 = inlined_call_operand.hbm [shape: f32[2,32,210], index: 0, kind: input, shape index: {}]
  %s1 = inlined_call_operand.vmem [shape: f32[2,1,32,1], index: 1, kind: output, shape index: {0}]
  %s2 = inlined_call_operand.vmem [shape: f32[2,1,32,1], index: 2, kind: output, shape index: {1}]
  %3 = xla_tuple %s1, %s2
  %s4 = sld [smem:[#allocation0]]
  $region65: #{tpu_custom_call.1} parent=0
    _
  %s6 = ssub.s32 1, %s4
  %s7 = scalar_select 0, %s6, %s4
  $region1: #{tpu_custom_call.1} parent=0
    #allocation4 [shape = 'u8[65536]{0}', space=vmem, size = 0x10000, scoped, tag = 'input window, operand 0']
    #allocation5 [shape = 's32[2]{0}', space=sflag, size = 0x8, scoped, tag = 'scoped memory for tpu_custom_call.1']
    %8 = vsyncpa [#allocation5], 0
    %s9 = scalar_lea.sflag [#allocation5], 1
    %10 = vsyncpa %s9, 0
    loop: start=0, step=1, limit=4
    $region2: #{tpu_custom_call.1} parent=1 // loop_pre_header
      _
    $region3: #{tpu_custom_call.1} parent=1 // loop_header
      %s12 = sphi 0, %s16
      %p13 = scmp.ge.s32.totalorder %s12, 4
      %s19 = sphi 0, %s38
      %s20 = sphi 0, %s34
      %s21 = sphi 0, %s30
      %s22 = sphi 0, %s19
      %s23 = sphi 0, %s20
      %s24 = sphi 0, %s21
      %s25 = sphi 0, %s22
      %s26 = sphi 0, %s23
      %s27 = sphi 0, %s24
      %s49 = sphi 0, %s51
      %s52 = sphi 0, %s49
      %s53 = sphi 0, %s52
      %s69 = sphi 0, %s53
      %s77 = sphi 0, %s79
      %s80 = sphi 0, %s77
      %s81 = sphi 0, %s80
      %s97 = sphi 0, %s81
      %s105 = sphi 0, %s107
      %s108 = sphi 0, %s105
      %s109 = sphi 0, %s108
      %s125 = sphi 0, %s109
    $region4: #{tpu_custom_call.1} parent=1 // loop_header_branch
      %15 = sbr.rel (%p13) target = $region8
    $region5: #{tpu_custom_call.1} parent=1 // loop_body
      %s17 = ssub.s32 %s12, 1
      %s18 = ssub.s32 %s12, 2
      %s28 = sadd.s32 1, %s21
      %p29 = scmp.ge.s32.totalorder %s28, 1
      %s30 = scalar_select %p29, 0, %s28
      %s31 = sadd.s32 1, %s20
      %s32 = scalar_select %p29, %s31, %s20
      %p33 = scmp.ge.s32.totalorder %s32, 1
      %s34 = scalar_select %p33, 0, %s32
      %s35 = sadd.s32 1, %s19
      %s36 = scalar_select %p33, %s35, %s19
      %p37 = scmp.ge.s32.totalorder %s36, 2
      %s38 = scalar_select %p37, 0, %s36
      %s39 = sadd.s32 %s20, %s21
      %p40 = scmp.lt.s32.totalorder %s39, 0
      %s41 = scalar_select %p40, %s39, 0
      %s42 = sadd.s32 %s34, %s30
      %p43 = scmp.lt.s32.totalorder %s42, 0
      %s44 = scalar_select %p43, %s42, 0
      %s45 = ssub.s32 %s19, %s38
      %s46 = ssub.s32 %s41, %s44
      %s47 = sor.u32 %s45, %s46
      %p48 = scmp.eq.s32.totalorder %s47, 0
      %s50 = sadd.s32 %s49, 1
      %s51 = scalar_select %p48, %s49, %s50
      %p54 = pneg %p48
      %p55 = scmp.eq.s32.totalorder %s12, 1
      %p56 = por %p54, %p55
      %p57 = scmp.ne.s32.totalorder %s49, %s52
      %p58 = scmp.eq.s32.totalorder %s12, 0
      %p59 = por %p57, %p58
      %p60 = scmp.ne.s32.totalorder %s49, %s52
      %p61 = scmp.eq.s32.totalorder %s17, 1
      %p62 = por %p60, %p61
      %p63 = scmp.ne.s32.totalorder %s52, %s53
      %p64 = scmp.eq.s32.totalorder %s17, 0
      %p65 = por %p63, %p64
      %p66 = scmp.ne.s32.totalorder %s52, %s53
      %p67 = scmp.eq.s32.totalorder %s18, 1
      %p68 = por %p66, %p67
      %p70 = scmp.ne.s32.totalorder %s53, %s69
      %p71 = scmp.eq.s32.totalorder %s18, 0
      %p72 = por %p70, %p71
      %s73 = ssub.s32 %s19, %s38
      %s74 = ssub.s32 %s20, %s34
      %s75 = sor.u32 %s73, %s74
      %p76 = scmp.eq.s32.totalorder %s75, 0
      %s78 = sadd.s32 %s77, 1
      %s79 = scalar_select %p76, %s77, %s78
      %p82 = pneg %p76
      %p83 = scmp.eq.s32.totalorder %s12, 1
      %p84 = por %p82, %p83
      %p85 = scmp.ne.s32.totalorder %s77, %s80
      %p86 = scmp.eq.s32.totalorder %s12, 0
      %p87 = por %p85, %p86
      %p88 = scmp.ne.s32.totalorder %s77, %s80
      %p89 = scmp.eq.s32.totalorder %s17, 1
      %p90 = por %p88, %p89
      %p91 = scmp.ne.s32.totalorder %s80, %s81
      %p92 = scmp.eq.s32.totalorder %s17, 0
      %p93 = por %p91, %p92
      %p94 = scmp.ne.s32.totalorder %s80, %s81
      %p95 = scmp.eq.s32.totalorder %s18, 1
      %p96 = por %p94, %p95
      %p98 = scmp.ne.s32.totalorder %s81, %s97
      %p99 = scmp.eq.s32.totalorder %s18, 0
      %p100 = por %p98, %p99
      %s101 = ssub.s32 %s19, %s38
      %s102 = ssub.s32 %s20, %s34
      %s103 = sor.u32 %s101, %s102
      %p104 = scmp.eq.s32.totalorder %s103, 0
      %s106 = sadd.s32 %s105, 1
      %s107 = scalar_select %p104, %s105, %s106
      %p110 = pneg %p104
      %p111 = scmp.eq.s32.totalorder %s12, 1
      %p112 = por %p110, %p111
      %p113 = scmp.ne.s32.totalorder %s105, %s108
      %p114 = scmp.eq.s32.totalorder %s12, 0
      %p115 = por %p113, %p114
      %p116 = scmp.ne.s32.totalorder %s105, %s108
      %p117 = scmp.eq.s32.totalorder %s17, 1
      %p118 = por %p116, %p117
      %p119 = scmp.ne.s32.totalorder %s108, %s109
      %p120 = scmp.eq.s32.totalorder %s17, 0
      %p121 = por %p119, %p120
      %p122 = scmp.ne.s32.totalorder %s108, %s109
      %p123 = scmp.eq.s32.totalorder %s18, 1
      %p124 = por %p122, %p123
      %p126 = scmp.ne.s32.totalorder %s109, %s125
      %p127 = scmp.eq.s32.totalorder %s18, 0
      %p128 = por %p126, %p127
      %p129 = scmp.le.s32.totalorder 1, %s12
      %p130 = scmp.lt.s32.totalorder %s12, 3
      %p131 = pnand %p129, %p130
      %p132 = pneg %p131
      // Predicated region
      $region9: #{tpu_custom_call.1} parent=5 // pred_check
        _
      $region10: #{tpu_custom_call.1} parent=5 // pred_check_branch
        %134 = sbr.rel (%p131) target = $region12
      $region11: #{tpu_custom_call.1} parent=5 // pred_region
        %s135 = ssub.s32 %s12, 1
      $region12: #{tpu_custom_call.1} parent=5 // pred_fallthru
        _
      %p136 = scmp.lt.s32.totalorder %s12, 2
      // Predicated region
      $region13: #{tpu_custom_call.1} parent=5 // pred_check
        %p137 = pneg %p136
      $region14: #{tpu_custom_call.1} parent=5 // pred_check_branch
        %139 = sbr.rel (%p137) target = $region16
      $region15: #{tpu_custom_call.1} parent=5 // pred_region
        // Predicated region
        $region17: #{tpu_custom_call.1} parent=15 // pred_check
          %p140 = pneg %p59
        $region18: #{tpu_custom_call.1} parent=15 // pred_check_branch
          %142 = sbr.rel (%p140) target = $region20
        $region19: #{tpu_custom_call.1} parent=15 // pred_region
          %s143 = sand.u32 %s49, 1
          %s144 = scalar_lea.sflag [#allocation5], %s143
          %s145 = sand.u32 %s49, 1
          %s146 = smul.addr %s145, 64
          %s147 = scalar_lea.vmem [#allocation4], %s146
          %s148 = sadd.s32 %s20, %s21
          %p149 = scmp.lt.s32.totalorder %s148, 0
          %s150 = scalar_select %p149, %s148, 0
          %s151 = smul.u32 2, %s150
          %s153 = ssub.s32 1024, 1024
          %154 = vsyncadd %s144, %s153
          %s155 = smul.addr %s19, 8
          %s156 = sadd.s32 %s151, %s155
          %s157 = smul.addr %s156, 128
          %s158 = scalar_lea.hbm %s0, %s157
          %s159 = sshll.u32 %s147, 4
          %s160 = int_to_ptr.vmem [resolvable:$true] %s159
          %165 = dma.hbm_to_vmem [thread:$0]  %s158, 1024, %s160, %s144, 256, 256, 16
        $region20: #{tpu_custom_call.1} parent=15 // pred_fallthru
          _
      $region16: #{tpu_custom_call.1} parent=5 // pred_fallthru
        _
      %p166 = scmp.le.s32.totalorder 1, %s12
      %p167 = scmp.lt.s32.totalorder %s12, 3
      %p168 = pnand %p166, %p167
      %p169 = pneg %p168
      // Predicated region
      $region21: #{tpu_custom_call.1} parent=5 // pred_check
        _
      $region22: #{tpu_custom_call.1} parent=5 // pred_check_branch
        %171 = sbr.rel (%p168) target = $region24
      $region23: #{tpu_custom_call.1} parent=5 // pred_region
        %s172 = ssub.s32 %s12, 1
        %s173 = sand.u32 %s52, 1
        %s174 = scalar_lea.sflag [#allocation5], %s173
        %s175 = sand.u32 %s52, 1
        %s176 = smul.addr %s175, 64
        %s177 = scalar_lea.vmem [#allocation4], %s176
        // Predicated region
        $region25: #{tpu_custom_call.1} parent=23 // pred_check
          %p178 = pneg %p65
        $region26: #{tpu_custom_call.1} parent=23 // pred_check_branch
          %180 = sbr.rel (%p178) target = $region28
        $region27: #{tpu_custom_call.1} parent=23 // pred_region
          %181 = dma.done %s174, 1024
        $region28: #{tpu_custom_call.1} parent=23 // pred_fallthru
          _
        %s182 = sand.u32 %s52, 1
        %s183 = scalar_lea.sflag [#allocation5], %s182
        %s184 = sand.u32 %s52, 1
        %s185 = smul.addr %s184, 64
        %s186 = scalar_lea.vmem [#allocation4], %s185
        %p187 = pneg %p65
        %p188 = pneg %p62
        %p189 = pneg %p93
        %p190 = pneg %p90
        %p191 = scmp.lt.s32.totalorder %s22, 1
        %s192 = scalar_select %p191, %s22, 1
        %p193 = scmp.lt.s32.totalorder %s23, 0
        %s194 = scalar_select %p193, %s23, 0
        %s195 = smul.addr %s194, 4
        %s196 = smul.addr %s192, 4
        %s197 = sadd.s32 %s195, %s196
        %s198 = smul.addr %s197, 8
        %s199 = scalar_lea.vmem %s1, %s198
        %p200 = pneg %p121
        %p201 = pneg %p118
        %p202 = scmp.lt.s32.totalorder %s22, 1
        %s203 = scalar_select %p202, %s22, 1
        %p204 = scmp.lt.s32.totalorder %s23, 0
        %s205 = scalar_select %p204, %s23, 0
        %s206 = smul.addr %s205, 4
        %s207 = smul.addr %s203, 4
        %s208 = sadd.s32 %s206, %s207
        %s209 = smul.addr %s208, 8
        %s210 = scalar_lea.vmem %s2, %s209
        %s211 = sadd.s32 %s23, %s24
        %p212 = scmp.lt.s32.totalorder %s211, 0
        %s213 = scalar_select %p212, %s211, 0
        %s214 = smul.u32 2, %s213
        %p215 = scmp.lt.s32.totalorder %s22, 1
        %s216 = scalar_select %p215, %s22, 1
        %p217 = scmp.lt.s32.totalorder %s23, 0
        %s218 = scalar_select %p217, %s23, 0
        %s219 = smul.addr %s218, 4
        %s220 = smul.addr %s216, 4
        %s221 = sadd.s32 %s219, %s220
        %s222 = smul.addr %s221, 8
        %s223 = scalar_lea.vmem %s1, %s222
        %p224 = scmp.lt.s32.totalorder %s22, 1
        %s225 = scalar_select %p224, %s22, 1
        %p226 = scmp.lt.s32.totalorder %s23, 0
        %s227 = scalar_select %p226, %s23, 0
        %s228 = smul.addr %s227, 4
        %s229 = smul.addr %s225, 4
        %s230 = sadd.s32 %s228, %s229
        %s231 = smul.addr %s230, 8
        %s232 = scalar_lea.vmem %s2, %s231
        %p233 = scmp.eq.s32.totalorder %s24, 0
        // Predicated region
        $region29: #{tpu_custom_call.1} parent=23 // pred_check
          %p234 = pneg %p233
        $region30: #{tpu_custom_call.1} parent=23 // pred_check_branch
          %236 = sbr.rel (%p234) target = $region32
        $region31: #{tpu_custom_call.1} parent=23 // pred_region
          %237 = vst [vmem:[#allocation2] sm:$0xff] 0.0
          %238 = vst [vmem:[#allocation2 + $0x8] sm:$0xff] 0.0
          %239 = vst [vmem:[#allocation2 + $0x10] sm:$0xff] 0.0
          %240 = vst [vmem:[#allocation2 + $0x18] sm:$0xff] 0.0
          %241 = vst [vmem:[#allocation2 + $0x20] sm:$0xff] 0.0
          %242 = vst [vmem:[#allocation2 + $0x28] sm:$0xff] 0.0
          %243 = vst [vmem:[#allocation2 + $0x30] sm:$0xff] 0.0
          %244 = vst [vmem:[#allocation2 + $0x38] sm:$0xff] 0.0
          %245 = vst [vmem:[#allocation3] sm:$0xff] -inf
          %246 = vst [vmem:[#allocation3 + $0x8] sm:$0xff] -inf
          %247 = vst [vmem:[#allocation3 + $0x10] sm:$0xff] -inf
          %248 = vst [vmem:[#allocation3 + $0x18] sm:$0xff] -inf
          %249 = vst [vmem:[#allocation3 + $0x20] sm:$0xff] -inf
          %250 = vst [vmem:[#allocation3 + $0x28] sm:$0xff] -inf
          %251 = vst [vmem:[#allocation3 + $0x30] sm:$0xff] -inf
          %252 = vst [vmem:[#allocation3 + $0x38] sm:$0xff] -inf
        $region32: #{tpu_custom_call.1} parent=23 // pred_fallthru
          _
        %s253 = sadd.s32 %s23, %s24
        %s254 = smul.u32 %s253, 256
        %s255 = ssub.s32 210, %s254
        %v256 = vld [vmem:[%s177] sm:$0xff]
        %v257 = vld [vmem:[%s177 + $0x8] sm:$0xff]
        %v258 = vld [vmem:[%s177 + $0x10] sm:$0xff]
        %v259 = vld [vmem:[%s177 + $0x18] sm:$0xff]
        %v260 = vld [vmem:[%s177 + $0x20] sm:$0xff]
        %v261 = vld [vmem:[%s177 + $0x28] sm:$0xff]
        %v262 = vld [vmem:[%s177 + $0x30] sm:$0xff]
        %v263 = vld [vmem:[%s177 + $0x38] sm:$0xff]
        %p264 = scmp.ge.s32.totalorder %s255, 256
        // Predicated region
        $region33: #{tpu_custom_call.1} parent=23 // pred_check
          %p265 = pneg %p264
        $region34: #{tpu_custom_call.1} parent=23 // pred_check_branch
          %267 = sbr.rel (%p265) target = $region36
        $region35: #{tpu_custom_call.1} parent=23 // pred_region
          %v268 = vld [vmem:[#allocation2] sm:$0xff]
          %v269 = vld [vmem:[#allocation2 + $0x8] sm:$0xff]
          %v270 = vld [vmem:[#allocation2 + $0x10] sm:$0xff]
          %v271 = vld [vmem:[#allocation2 + $0x18] sm:$0xff]
          %v272 = vld [vmem:[#allocation2 + $0x20] sm:$0xff]
          %v273 = vld [vmem:[#allocation2 + $0x28] sm:$0xff]
          %v274 = vld [vmem:[#allocation2 + $0x30] sm:$0xff]
          %v275 = vld [vmem:[#allocation2 + $0x38] sm:$0xff]
          %v276 = vadd.f32 %v268, %v256
          %v277 = vadd.f32 %v269, %v257
          %v278 = vadd.f32 %v270, %v258
          %v279 = vadd.f32 %v271, %v259
          %v280 = vadd.f32 %v272, %v260
          %v281 = vadd.f32 %v273, %v261
          %v282 = vadd.f32 %v274, %v262
          %v283 = vadd.f32 %v275, %v263
          %284 = vst [vmem:[#allocation2] sm:$0xff] %v276
          %285 = vst [vmem:[#allocation2 + $0x8] sm:$0xff] %v277
          %286 = vst [vmem:[#allocation2 + $0x10] sm:$0xff] %v278
          %287 = vst [vmem:[#allocation2 + $0x18] sm:$0xff] %v279
          %288 = vst [vmem:[#allocation2 + $0x20] sm:$0xff] %v280
          %289 = vst [vmem:[#allocation2 + $0x28] sm:$0xff] %v281
          %290 = vst [vmem:[#allocation2 + $0x30] sm:$0xff] %v282
          %291 = vst [vmem:[#allocation2 + $0x38] sm:$0xff] %v283
          %v292 = vld [vmem:[#allocation3] sm:$0xff]
          %v293 = vld [vmem:[#allocation3 + $0x8] sm:$0xff]
          %v294 = vld [vmem:[#allocation3 + $0x10] sm:$0xff]
          %v295 = vld [vmem:[#allocation3 + $0x18] sm:$0xff]
          %v296 = vld [vmem:[#allocation3 + $0x20] sm:$0xff]
          %v297 = vld [vmem:[#allocation3 + $0x28] sm:$0xff]
          %v298 = vld [vmem:[#allocation3 + $0x30] sm:$0xff]
          %v299 = vld [vmem:[#allocation3 + $0x38] sm:$0xff]
          %v300 = vmax.f32 %v292, %v256
          %v301 = vmax.f32 %v293, %v257
          %v302 = vmax.f32 %v294, %v258
          %v303 = vmax.f32 %v295, %v259
          %v304 = vmax.f32 %v296, %v260
          %v305 = vmax.f32 %v297, %v261
          %v306 = vmax.f32 %v298, %v262
          %v307 = vmax.f32 %v299, %v263
          %308 = vst [vmem:[#allocation3] sm:$0xff] %v300
          %309 = vst [vmem:[#allocation3 + $0x8] sm:$0xff] %v301
          %310 = vst [vmem:[#allocation3 + $0x10] sm:$0xff] %v302
          %311 = vst [vmem:[#allocation3 + $0x18] sm:$0xff] %v303
          %312 = vst [vmem:[#allocation3 + $0x20] sm:$0xff] %v304
          %313 = vst [vmem:[#allocation3 + $0x28] sm:$0xff] %v305
          %314 = vst [vmem:[#allocation3 + $0x30] sm:$0xff] %v306
          %315 = vst [vmem:[#allocation3 + $0x38] sm:$0xff] %v307
        $region36: #{tpu_custom_call.1} parent=23 // pred_fallthru
          _
        %p316 = scmp.lt.s32.totalorder %s255, 256
        // Predicated region
        $region37: #{tpu_custom_call.1} parent=23 // pred_check
          %p317 = pneg %p316
        $region38: #{tpu_custom_call.1} parent=23 // pred_check_branch
          %319 = sbr.rel (%p317) target = $region40
        $region39: #{tpu_custom_call.1} parent=23 // pred_region
          %v320 = vlaneseq
          %v321 = vand.u32 %v320, 127
          %v322 = vadd.s32 %v321, 128
          %v323 = vstv %s255
          %vm324 = vcmp.lt.s32.totalorder %v321, %v323
          %vm325 = vcmp.lt.s32.totalorder %v322, %v323
          %v326 = vld [vmem:[#allocation2] sm:$0xff]
          %v327 = vld [vmem:[#allocation2 + $0x8] sm:$0xff]
          %v328 = vld [vmem:[#allocation2 + $0x10] sm:$0xff]
          %v329 = vld [vmem:[#allocation2 + $0x18] sm:$0xff]
          %v330 = vld [vmem:[#allocation2 + $0x20] sm:$0xff]
          %v331 = vld [vmem:[#allocation2 + $0x28] sm:$0xff]
          %v332 = vld [vmem:[#allocation2 + $0x30] sm:$0xff]
          %v333 = vld [vmem:[#allocation2 + $0x38] sm:$0xff]
          %v334 = vsel %vm324, %v256, 0.0
          %v335 = vsel %vm325, %v257, 0.0
          %v336 = vsel %vm324, %v258, 0.0
          %v337 = vsel %vm325, %v259, 0.0
          %v338 = vsel %vm324, %v260, 0.0
          %v339 = vsel %vm325, %v261, 0.0
          %v340 = vsel %vm324, %v262, 0.0
          %v341 = vsel %vm325, %v263, 0.0
          %v342 = vadd.f32 %v326, %v334
          %v343 = vadd.f32 %v327, %v335
          %v344 = vadd.f32 %v328, %v336
          %v345 = vadd.f32 %v329, %v337
          %v346 = vadd.f32 %v330, %v338
          %v347 = vadd.f32 %v331, %v339
          %v348 = vadd.f32 %v332, %v340
          %v349 = vadd.f32 %v333, %v341
          %350 = vst [vmem:[#allocation2] sm:$0xff] %v342
          %351 = vst [vmem:[#allocation2 + $0x8] sm:$0xff] %v343
          %352 = vst [vmem:[#allocation2 + $0x10] sm:$0xff] %v344
          %353 = vst [vmem:[#allocation2 + $0x18] sm:$0xff] %v345
          %354 = vst [vmem:[#allocation2 + $0x20] sm:$0xff] %v346
          %355 = vst [vmem:[#allocation2 + $0x28] sm:$0xff] %v347
          %356 = vst [vmem:[#allocation2 + $0x30] sm:$0xff] %v348
          %357 = vst [vmem:[#allocation2 + $0x38] sm:$0xff] %v349
          %v358 = vld [vmem:[#allocation3] sm:$0xff]
          %v359 = vld [vmem:[#allocation3 + $0x8] sm:$0xff]
          %v360 = vld [vmem:[#allocation3 + $0x10] sm:$0xff]
          %v361 = vld [vmem:[#allocation3 + $0x18] sm:$0xff]
          %v362 = vld [vmem:[#allocation3 + $0x20] sm:$0xff]
          %v363 = vld [vmem:[#allocation3 + $0x28] sm:$0xff]
          %v364 = vld [vmem:[#allocation3 + $0x30] sm:$0xff]
          %v365 = vld [vmem:[#allocation3 + $0x38] sm:$0xff]
          %v366 = vsel %vm324, %v256, -inf
          %v367 = vsel %vm325, %v257, -inf
          %v368 = vsel %vm324, %v258, -inf
          %v369 = vsel %vm325, %v259, -inf
          %v370 = vsel %vm324, %v260, -inf
          %v371 = vsel %vm325, %v261, -inf
          %v372 = vsel %vm324, %v262, -inf
          %v373 = vsel %vm325, %v263, -inf
          %v374 = vmax.f32 %v358, %v366
          %v375 = vmax.f32 %v359, %v367
          %v376 = vmax.f32 %v360, %v368
          %v377 = vmax.f32 %v361, %v369
          %v378 = vmax.f32 %v362, %v370
          %v379 = vmax.f32 %v363, %v371
          %v380 = vmax.f32 %v364, %v372
          %v381 = vmax.f32 %v365, %v373
          %382 = vst [vmem:[#allocation3] sm:$0xff] %v374
          %383 = vst [vmem:[#allocation3 + $0x8] sm:$0xff] %v375
          %384 = vst [vmem:[#allocation3 + $0x10] sm:$0xff] %v376
          %385 = vst [vmem:[#allocation3 + $0x18] sm:$0xff] %v377
          %386 = vst [vmem:[#allocation3 + $0x20] sm:$0xff] %v378
          %387 = vst [vmem:[#allocation3 + $0x28] sm:$0xff] %v379
          %388 = vst [vmem:[#allocation3 + $0x30] sm:$0xff] %v380
          %389 = vst [vmem:[#allocation3 + $0x38] sm:$0xff] %v381
        $region40: #{tpu_custom_call.1} parent=23 // pred_fallthru
          _
        // Predicated region
        $region41: #{tpu_custom_call.1} parent=23 // pred_check
          %p390 = pneg %p233
        $region42: #{tpu_custom_call.1} parent=23 // pred_check_branch
          %392 = sbr.rel (%p390) target = $region44
        $region43: #{tpu_custom_call.1} parent=23 // pred_region
          %v393 = vld [vmem:[#allocation2] sm:$0xff]
          %v394 = vld [vmem:[#allocation2 + $0x8] sm:$0xff]
          %v395 = vld [vmem:[#allocation2 + $0x10] sm:$0xff]
          %v396 = vld [vmem:[#allocation2 + $0x18] sm:$0xff]
          %v397 = vld [vmem:[#allocation2 + $0x20] sm:$0xff]
          %v398 = vld [vmem:[#allocation2 + $0x28] sm:$0xff]
          %v399 = vld [vmem:[#allocation2 + $0x30] sm:$0xff]
          %v400 = vld [vmem:[#allocation2 + $0x38] sm:$0xff]
          %v401 = vadd.f32 %v393, %v394
          %402 = vadd.xlane.f32.xlu0 %v401
          %v403 = vpop.xlane.xlu0 %402
          %v404 = vadd.f32 %v395, %v396
          %405 = vadd.xlane.f32.xlu0 %v404
          %v406 = vpop.xlane.xlu0 %405
          %v407 = vadd.f32 %v397, %v398
          %408 = vadd.xlane.f32.xlu0 %v407
          %v409 = vpop.xlane.xlu0 %408
          %v410 = vadd.f32 %v399, %v400
          %411 = vadd.xlane.f32.xlu0 %v410
          %v412 = vpop.xlane.xlu0 %411
          %vm413 = vcmask 7168
          %414 = vst.msk [vmem:[%s223] sm:$0xff] %vm413, %v403
          %415 = vst.msk [vmem:[%s223 + $0x8] sm:$0xff] %vm413, %v406
          %416 = vst.msk [vmem:[%s223 + $0x10] sm:$0xff] %vm413, %v409
          %417 = vst.msk [vmem:[%s223 + $0x18] sm:$0xff] %vm413, %v412
          %v418 = vld [vmem:[#allocation3] sm:$0xff]
          %v419 = vld [vmem:[#allocation3 + $0x8] sm:$0xff]
          %v420 = vld [vmem:[#allocation3 + $0x10] sm:$0xff]
          %v421 = vld [vmem:[#allocation3 + $0x18] sm:$0xff]
          %v422 = vld [vmem:[#allocation3 + $0x20] sm:$0xff]
          %v423 = vld [vmem:[#allocation3 + $0x28] sm:$0xff]
          %v424 = vld [vmem:[#allocation3 + $0x30] sm:$0xff]
          %v425 = vld [vmem:[#allocation3 + $0x38] sm:$0xff]
          %v426 = vmax.f32 %v418, %v419
          %427 = vmax.xlane.f32.xlu0 %v426
          %v428 = vpop.xlane.xlu0 %427
          %v429 = vmax.f32 %v420, %v421
          %430 = vmax.xlane.f32.xlu0 %v429
          %v431 = vpop.xlane.xlu0 %430
          %v432 = vmax.f32 %v422, %v423
          %433 = vmax.xlane.f32.xlu0 %v432
          %v434 = vpop.xlane.xlu0 %433
          %v435 = vmax.f32 %v424, %v425
          %436 = vmax.xlane.f32.xlu0 %v435
          %v437 = vpop.xlane.xlu0 %436
          %438 = vst.msk [vmem:[%s232] sm:$0xff] %vm413, %v428
          %439 = vst.msk [vmem:[%s232 + $0x8] sm:$0xff] %vm413, %v431
          %440 = vst.msk [vmem:[%s232 + $0x10] sm:$0xff] %vm413, %v434
          %441 = vst.msk [vmem:[%s232 + $0x18] sm:$0xff] %vm413, %v437
        $region44: #{tpu_custom_call.1} parent=23 // pred_fallthru
          _
        %p442 = scmp.lt.s32.totalorder %s22, 1
        %s443 = scalar_select %p442, %s22, 1
        %p444 = scmp.lt.s32.totalorder %s23, 0
        %s445 = scalar_select %p444, %s23, 0
        %s446 = smul.addr %s445, 4
        %s447 = smul.addr %s443, 4
        %s448 = sadd.s32 %s446, %s447
        %s449 = smul.addr %s448, 8
        %s450 = scalar_lea.vmem %s1, %s449
        %p451 = scmp.lt.s32.totalorder %s22, 1
        %s452 = scalar_select %p451, %s22, 1
        %p453 = scmp.lt.s32.totalorder %s23, 0
        %s454 = scalar_select %p453, %s23, 0
        %s455 = smul.addr %s454, 4
        %s456 = smul.addr %s452, 4
        %s457 = sadd.s32 %s455, %s456
        %s458 = smul.addr %s457, 8
        %s459 = scalar_lea.vmem %s2, %s458
        // Predicated region
        $region45: #{tpu_custom_call.1} parent=23 // pred_check
          %p460 = pneg %p90
        $region46: #{tpu_custom_call.1} parent=23 // pred_check_branch
          %462 = sbr.rel (%p460) target = $region48
        $region47: #{tpu_custom_call.1} parent=23 // pred_region
          _
        $region48: #{tpu_custom_call.1} parent=23 // pred_fallthru
          _
        // Predicated region
        $region49: #{tpu_custom_call.1} parent=23 // pred_check
          %p463 = pneg %p118
        $region50: #{tpu_custom_call.1} parent=23 // pred_check_branch
          %465 = sbr.rel (%p463) target = $region52
        $region51: #{tpu_custom_call.1} parent=23 // pred_region
          _
        $region52: #{tpu_custom_call.1} parent=23 // pred_fallthru
          _
      $region24: #{tpu_custom_call.1} parent=5 // pred_fallthru
        _
      %p466 = scmp.le.s32.totalorder 2, %s12
      // Predicated region
      $region53: #{tpu_custom_call.1} parent=5 // pred_check
        %p467 = pneg %p466
      $region54: #{tpu_custom_call.1} parent=5 // pred_check_branch
        %469 = sbr.rel (%p467) target = $region56
      $region55: #{tpu_custom_call.1} parent=5 // pred_region
        %s470 = ssub.s32 %s12, 2
        // Predicated region
        $region57: #{tpu_custom_call.1} parent=55 // pred_check
          %p471 = pneg %p96
        $region58: #{tpu_custom_call.1} parent=55 // pred_check_branch
          %473 = sbr.rel (%p471) target = $region60
        $region59: #{tpu_custom_call.1} parent=55 // pred_region
          %p474 = scmp.lt.s32.totalorder %s25, 1
          %s475 = scalar_select %p474, %s25, 1
          %p476 = scmp.lt.s32.totalorder %s26, 0
          %s477 = scalar_select %p476, %s26, 0
          %s478 = smul.addr %s477, 4
          %s479 = smul.addr %s475, 4
          %s480 = sadd.s32 %s478, %s479
          %s481 = smul.addr %s480, 8
          %s482 = scalar_lea.vmem %s1, %s481
        $region60: #{tpu_custom_call.1} parent=55 // pred_fallthru
          _
        // Predicated region
        $region61: #{tpu_custom_call.1} parent=55 // pred_check
          %p483 = pneg %p124
        $region62: #{tpu_custom_call.1} parent=55 // pred_check_branch
          %485 = sbr.rel (%p483) target = $region64
        $region63: #{tpu_custom_call.1} parent=55 // pred_region
          %p486 = scmp.lt.s32.totalorder %s25, 1
          %s487 = scalar_select %p486, %s25, 1
          %p488 = scmp.lt.s32.totalorder %s26, 0
          %s489 = scalar_select %p488, %s26, 0
          %s490 = smul.addr %s489, 4
          %s491 = smul.addr %s487, 4
          %s492 = sadd.s32 %s490, %s491
          %s493 = smul.addr %s492, 8
          %s494 = scalar_lea.vmem %s2, %s493
        $region64: #{tpu_custom_call.1} parent=55 // pred_fallthru
          _
      $region56: #{tpu_custom_call.1} parent=5 // pred_fallthru
        _
    $region6: #{tpu_custom_call.1} parent=1 // loop_footer
      %s16 = sadd.s32 1, %s12
    $region7: #{tpu_custom_call.1} parent=1 // loop_footer_branch
      %11 = sbr.rel target = $region3
    $region8: #{tpu_custom_call.1} parent=1 // loop_exit
      _
    %495 = vsyncpa [#allocation5], 1
    %s496 = scalar_lea.sflag [#allocation5], 1
    %497 = vsyncpa %s496, 1

</llo_original>
